<compile_context>
chip_gen: v7x
topology: tpu7x:2x2x1
jax: 0.10.0
libtpu: 0.0.40
codegen_flags: <defaults>
</compile_context>

<pallas_src>
import functools

import jax
import jax.numpy as jnp
from jax.experimental import pallas as pl
from jax.experimental.pallas import tpu as pltpu


# ---------------------------------------------------------------------------
# Kernel
# ---------------------------------------------------------------------------
def _ffn_kernel(x_ref, w1_ref, b1_ref, w2_ref, b2_ref, o_ref):
    # x_ref:  (tm, K)   x.dtype   w1_ref: (K, H)  bf16   b1_ref: (1, H)  f32
    # w2_ref: (H, Np)   bf16      b2_ref: (1, Np) f32    o_ref: (tm, Np) x.dtype
    x = x_ref[...].astype(jnp.bfloat16)                     # VPU cast, hidden under MXU
    h = jnp.dot(x, w1_ref[...], preferred_element_type=jnp.float32)
    h = jnp.maximum(h + b1_ref[...], 0.0)                   # bias + ReLU in f32
    out = jnp.dot(h.astype(w2_ref.dtype), w2_ref[...],
                  preferred_element_type=jnp.float32)
    o_ref[...] = (out + b2_ref[...]).astype(o_ref.dtype)


# ---------------------------------------------------------------------------
# Helpers
# ---------------------------------------------------------------------------
def _round_up(x, m):
    return ((x + m - 1) // m) * m


def _cdiv(a, b):
    return -(-a // b)


def _vmem_capacity_bytes():
    """Per-core VMEM capacity; conservative 64 MiB fallback (v7x-safe)."""
    try:
        return int(pltpu.get_tpu_info().vmem_capacity_bytes)
    except Exception:  # query unavailable -> assume the smallest generation
        return 64 * 1024 * 1024


def _vmem_estimate(tm, in_dim, hidden, n_pad, x_itemsize, out_itemsize):
    """Live-VMEM estimate matching what the compiler actually allocates."""
    # Resident weight/bias blocks still get the default 2 buffers each
    # (see TODO about pl.Buffered(1)) -> count them twice.
    weights = 2 * (in_dim * hidden * 2 + hidden * n_pad * 2
                   + (hidden + n_pad) * 4)
    x_tiles = 2 * tm * in_dim * x_itemsize        # double-buffered x tiles
    out_tiles = 2 * tm * n_pad * out_itemsize     # double-buffered out tiles
    h_interm = tm * hidden * (4 + 2)              # f32 h + its bf16 copy
    x_cast = tm * in_dim * 2                      # in-kernel bf16 copy of x
    return int(1.3 * (weights + x_tiles + out_tiles + h_interm + x_cast))


def _pick_row_tile(M, tm):
    """Row tile: sublane-aligned, small-M friendly, >=2 tiles for v7x megacore."""
    if M <= 8:
        return M                      # single block == full dim (no padding)
    if M <= tm:
        # Small M: aim for two row tiles so both v7x TensorCores get work;
        # round to the 8-sublane granule (not 128) to avoid 8x padded MXU work.
        return max(8, _round_up(_cdiv(M, 2), 8))
    return tm


# ---------------------------------------------------------------------------
# One-time weight preparation (hoisted out of the per-call path)
# ---------------------------------------------------------------------------
def prepare_feedforward_params(w1, b1, w2, b2):
    """bf16 cast + lane padding, done ONCE at init time.

    Weights are stored (in_features, out_features), i.e. PyTorch's nn.Linear
    weight transposed, so the kernel computes x @ W + b directly on the MXU.
    """
    in_dim, hidden = w1.shape
    n_out = w2.shape[1]
    n_pad = _round_up(n_out, 128)     # lane-dense output (unmasked vst)

    w1_b = w1.astype(jnp.bfloat16)
    w2_p = jnp.zeros((hidden, n_pad), jnp.bfloat16).at[:, :n_out].set(
        w2.astype(jnp.bfloat16))
    b1_2d = b1.reshape(1, hidden).astype(jnp.float32)
    b2_2d = jnp.zeros((1, n_pad), jnp.float32).at[:, :n_out].set(
        b2.reshape(1, n_out).astype(jnp.float32))
    return w1_b, b1_2d, w2_p, b2_2d


# ---------------------------------------------------------------------------
# Fused forward (eval mode)
# ---------------------------------------------------------------------------
@functools.partial(jax.jit, static_argnames=("num_classes", "tm"))
def feedforward_pallas(x, w1_b, b1_2d, w2_p, b2_2d, *, num_classes, tm=None):
    """x: (..., input_dim) -> (..., num_classes). Prepared weights required."""
    in_dim = x.shape[-1]
    hidden = w1_b.shape[1]
    n_pad = w2_p.shape[1]
    lead = x.shape[:-1]

    x2d = x.reshape(-1, in_dim)
    M = x2d.shape[0]

    vmem_cap = _vmem_capacity_bytes()
    budget = int(0.8 * vmem_cap)      # leave headroom for compiler scratch

    if tm is None:
        # 128-MiB-VMEM chips (v5e/v6e): bigger row tiles -> closer to HBM
        # roofline; 64-MiB chips (v7x): keep 256.
        tm = 512 if vmem_cap >= 100 * 1024 * 1024 else 256

    tm_eff = _pick_row_tile(M, tm)
    x_isz = x2d.dtype.itemsize
    o_isz = x.dtype.itemsize
    while tm_eff > 128 and _vmem_estimate(tm_eff, in_dim, hidden, n_pad,
                                          x_isz, o_isz) > budget:
        tm_eff //= 2                  # stays a multiple of 8

    grid = (_cdiv(M, tm_eff),)        # Pallas masks the partial last tile

    vmem_bytes = _vmem_estimate(tm_eff, in_dim, hidden, n_pad, x_isz, o_isz)
    vmem_bytes = min(max(vmem_bytes, 32 * 1024 * 1024), budget)

    out_pad = pl.pallas_call(
        _ffn_kernel,
        out_shape=jax.ShapeDtypeStruct((M, n_pad), x.dtype),
        grid_spec=pltpu.PrefetchScalarGridSpec(
            num_scalar_prefetch=0,
            grid=grid,
            in_specs=[
                pl.BlockSpec((tm_eff, in_dim), lambda i: (i, 0)),   # x rows
                pl.BlockSpec((in_dim, hidden), lambda i: (0, 0)),   # W1 (resident)
                pl.BlockSpec((1, hidden), lambda i: (0, 0)),        # b1
                pl.BlockSpec((hidden, n_pad), lambda i: (0, 0)),    # W2 (resident)
                pl.BlockSpec((1, n_pad), lambda i: (0, 0)),         # b2
            ],
            out_specs=pl.BlockSpec((tm_eff, n_pad), lambda i: (i, 0)),
        ),
        compiler_params=pltpu.CompilerParams(
            dimension_semantics=("parallel",),
            vmem_limit_bytes=vmem_bytes,
        ),
    )(x2d, w1_b, b1_2d, w2_p, b2_2d)

    out = out_pad[:, :num_classes]    # drop lane padding
    return out.reshape(*lead, num_classes)


# ---------------------------------------------------------------------------
# Parameter init (mirrors nn.Linear's U(-1/sqrt(fan_in), 1/sqrt(fan_in)))
# ---------------------------------------------------------------------------
def init_feedforward_params(key, input_dim, embed_dim=None, num_classes=None,
                            dtype=jnp.float32):
    if num_classes is None:
        num_classes = input_dim if embed_dim is None else embed_dim
    if embed_dim is None:
        embed_dim = input_dim
    hidden = 4 * embed_dim

    k1, k2, k3, k4 = jax.random.split(key, 4)
    lim1 = 1.0 / jnp.sqrt(input_dim)
    lim2 = 1.0 / jnp.sqrt(hidden)
    # weights stored (in_features, out_features) = PyTorch weight transposed
    w1 = jax.random.uniform(k1, (input_dim, hidden), dtype, -lim1, lim1)
    b1 = jax.random.uniform(k2, (hidden,), dtype, -lim1, lim1)
    w2 = jax.random.uniform(k3, (hidden, num_classes), dtype, -lim2, lim2)
    b2 = jax.random.uniform(k4, (num_classes,), dtype, -lim2, lim2)
    return w1, b1, w2, b2


if __name__ == "__main__":
    # FeedFoward(input_dim=32): embed_dim -> 32, hidden -> 128, num_classes -> 32
    batch, seq, input_dim = 2, 8, 32

    key = jax.random.PRNGKey(0)
    kx, kp = jax.random.split(key)
    x = jax.random.normal(kx, (batch, seq, input_dim), jnp.float32)
    w1, b1, w2, b2 = init_feedforward_params(kp, input_dim)
    num_classes = w2.shape[1]

    # One-time weight preparation (bf16 cast + lane padding), then the call.
    prepared = prepare_feedforward_params(w1, b1, w2, b2)
    out = feedforward_pallas(x, *prepared, num_classes=num_classes)
    out = jax.block_until_ready(out)

    # Reference in plain JAX f32 (eval-mode dropout == identity).
    ref = jnp.maximum(x @ w1 + b1, 0.0) @ w2 + b2
    assert out.shape == (batch, seq, num_classes)
    # bf16 matmul operands with f32 accumulation -> loosened tolerance.
    max_err = float(jnp.max(jnp.abs(out - ref)))
    assert jnp.allclose(out, ref, atol=5e-2, rtol=5e-2), max_err

    print("KERNEL_OK")
</pallas_src>

<mosaic_0001>
module attributes {stable_mosaic.version = 11 : i64} {
  func.func @_ffn_kernel(%arg0: i32, %arg1: memref<8x32xf32, #tpu.memory_space<vmem>>, %arg2: memref<32x128xbf16, #tpu.memory_space<vmem>>, %arg3: memref<1x128xf32, #tpu.memory_space<vmem>>, %arg4: memref<128x128xbf16, #tpu.memory_space<vmem>>, %arg5: memref<1x128xf32, #tpu.memory_space<vmem>>, %arg6: memref<8x128xf32, #tpu.memory_space<vmem>>) attributes {dimension_semantics = [#tpu.dimension_semantics<parallel>], iteration_bounds = array<i64: 2>, scalar_prefetch = 0 : i64, scratch_operands = 0 : i64, tpu.core_type = #tpu.core_type<tc>, window_params = [{transform_indices = @transform_0, window_bounds = array<i64: 8, 32>}, {pipeline_mode = #tpu.pipeline_mode<synchronous>, transform_indices = @transform_1, window_bounds = array<i64: 32, 128>}, {pipeline_mode = #tpu.pipeline_mode<synchronous>, transform_indices = @transform_2, window_bounds = array<i64: 1, 128>}, {pipeline_mode = #tpu.pipeline_mode<synchronous>, transform_indices = @transform_3, window_bounds = array<i64: 128, 128>}, {pipeline_mode = #tpu.pipeline_mode<synchronous>, transform_indices = @transform_4, window_bounds = array<i64: 1, 128>}, {transform_indices = @transform_5, window_bounds = array<i64: 8, 128>}]} {
    %c0 = arith.constant 0 : index
    %c0_0 = arith.constant 0 : index
    %0 = vector.load %arg1[%c0, %c0_0] : memref<8x32xf32, #tpu.memory_space<vmem>>, vector<8x32xf32>
    %1 = arith.truncf %0 : vector<8x32xf32> to vector<8x32xbf16>
    %c0_1 = arith.constant 0 : index
    %c0_2 = arith.constant 0 : index
    %2 = vector.load %arg2[%c0_1, %c0_2] : memref<32x128xbf16, #tpu.memory_space<vmem>>, vector<32x128xbf16>
    %cst = arith.constant dense<0.000000e+00> : vector<8x128xf32>
    %3 = tpu.matmul %1, %2, %cst {dimension_numbers = #tpu.dot_dimension_numbers<[1], [0], [0], [1], [0, 0, 1, 1], [], []>} : vector<8x32xbf16>, vector<32x128xbf16>, vector<8x128xf32> -> vector<8x128xf32>
    %c0_3 = arith.constant 0 : index
    %c0_4 = arith.constant 0 : index
    %4 = vector.load %arg3[%c0_3, %c0_4] : memref<1x128xf32, #tpu.memory_space<vmem>>, vector<1x128xf32>
    %5 = vector.broadcast %4 : vector<1x128xf32> to vector<8x128xf32>
    %6 = arith.addf %3, %5 : vector<8x128xf32>
    %cst_5 = arith.constant 0.000000e+00 : f32
    %7 = vector.broadcast %cst_5 : f32 to vector<8x128xf32>
    %8 = arith.maximumf %6, %7 : vector<8x128xf32>
    %9 = arith.truncf %8 : vector<8x128xf32> to vector<8x128xbf16>
    %c0_6 = arith.constant 0 : index
    %c0_7 = arith.constant 0 : index
    %10 = vector.load %arg4[%c0_6, %c0_7] : memref<128x128xbf16, #tpu.memory_space<vmem>>, vector<128x128xbf16>
    %cst_8 = arith.constant dense<0.000000e+00> : vector<8x128xf32>
    %11 = tpu.matmul %9, %10, %cst_8 {dimension_numbers = #tpu.dot_dimension_numbers<[1], [0], [0], [1], [0, 0, 1, 1], [], []>} : vector<8x128xbf16>, vector<128x128xbf16>, vector<8x128xf32> -> vector<8x128xf32>
    %c0_9 = arith.constant 0 : index
    %c0_10 = arith.constant 0 : index
    %12 = vector.load %arg5[%c0_9, %c0_10] : memref<1x128xf32, #tpu.memory_space<vmem>>, vector<1x128xf32>
    %13 = vector.broadcast %12 : vector<1x128xf32> to vector<8x128xf32>
    %14 = arith.addf %11, %13 : vector<8x128xf32>
    %c0_11 = arith.constant 0 : index
    %c0_12 = arith.constant 0 : index
    %15 = vector.load %arg6[%c0_11, %c0_12] : memref<8x128xf32, #tpu.memory_space<vmem>>, vector<8x128xf32>
    tpu.vector_store %arg6[%c0_11, %c0_12], %14 {strides = array<i32>} : memref<8x128xf32, #tpu.memory_space<vmem>>, vector<8x128xf32>,
    return
  }
  func.func @transform_0(%arg0: i32) -> (i32, i32) {
    %c0_i32 = arith.constant 0 : i32
    %c0_i32_0 = arith.constant 0 : i32
    return %arg0, %c0_i32 : i32, i32
  }
  func.func @transform_1(%arg0: i32) -> (i32, i32) {
    %c0_i32 = arith.constant 0 : i32
    %c0_i32_0 = arith.constant 0 : i32
    %c0_i32_1 = arith.constant 0 : i32
    return %c0_i32, %c0_i32_0 : i32, i32
  }
  func.func @transform_2(%arg0: i32) -> (i32, i32) {
    %c0_i32 = arith.constant 0 : i32
    %c0_i32_0 = arith.constant 0 : i32
    %c0_i32_1 = arith.constant 0 : i32
    return %c0_i32, %c0_i32_0 : i32, i32
  }
  func.func @transform_3(%arg0: i32) -> (i32, i32) {
    %c0_i32 = arith.constant 0 : i32
    %c0_i32_0 = arith.constant 0 : i32
    %c0_i32_1 = arith.constant 0 : i32
    return %c0_i32, %c0_i32_0 : i32, i32
  }
  func.func @transform_4(%arg0: i32) -> (i32, i32) {
    %c0_i32 = arith.constant 0 : i32
    %c0_i32_0 = arith.constant 0 : i32
    %c0_i32_1 = arith.constant 0 : i32
    return %c0_i32, %c0_i32_0 : i32, i32
  }
  func.func @transform_5(%arg0: i32) -> (i32, i32) {
    %c0_i32 = arith.constant 0 : i32
    %c0_i32_0 = arith.constant 0 : i32
    return %arg0, %c0_i32 : i32, i32
  }
}

</mosaic_0001>

<llo_original>
// kernel: feedforward_pallas.1
$region0: #{feedforward_pallas.1}
  #allocation0 [shape = 'u32[]', space=smem, size = 0x4, offset = 0x4, fixed_abs, tag = 'smem constant byte address 0x4 - core index']
  #allocation1 [shape = 'u32[144,128]{1,0:T(1,128)}', space=vmem, size = 0x12000, scoped, tag = 'internal scratch']
  %s0 = inlined_call_operand.hbm [shape: f32[16,32], index: 0, kind: input, shape index: {}]
  %s1 = inlined_call_operand.hbm [shape: bf16[32,128], index: 1, kind: input, shape index: {}]
  %s2 = inlined_call_operand.vmem [shape: f32[1,128], index: 2, kind: input, shape index: {}]
  %s3 = inlined_call_operand.hbm [shape: bf16[128,128], index: 3, kind: input, shape index: {}]
  %s4 = inlined_call_operand.vmem [shape: f32[1,128], index: 4, kind: input, shape index: {}]
  %s5 = inlined_call_operand.vmem [shape: f32[16,128], index: 5, kind: output, shape index: {}]
  %s6 = sld [smem:[#allocation0]]
  $region65: #{feedforward_pallas.1} parent=0
    _
  %s8 = ssub.s32 1, %s6
  %s9 = scalar_select 0, %s8, %s6
  $region1: #{feedforward_pallas.1} parent=0
    #allocation2 [shape = 'u8[8192]{0}', space=vmem, size = 0x2000, scoped, tag = 'input window, operand 0']
    #allocation3 [shape = 's32[2]{0}', space=sflag, size = 0x8, scoped, tag = 'scoped memory for feedforward_pallas.1']
    #allocation4 [shape = 'u8[8192]{0}', space=vmem, size = 0x2000, scoped, tag = 'input window, operand 1, single buffered']
    #allocation5 [shape = 's32[1]{0}', space=sflag, size = 0x4, scoped, tag = 'scoped memory for feedforward_pallas.1']
    #allocation6 [shape = 'u8[32768]{0}', space=vmem, size = 0x8000, scoped, tag = 'input window, operand 3, single buffered']
    %10 = vsyncpa [#allocation3], 0
    %s11 = scalar_lea.sflag [#allocation3], 1
    %12 = vsyncpa %s11, 0
    %13 = vsyncpa [#allocation5], 0
    loop: start=0, step=1, limit=4
    $region2: #{feedforward_pallas.1} parent=1 // loop_pre_header
      _
    $region3: #{feedforward_pallas.1} parent=1 // loop_header
      %s15 = sphi 0, %s19
      %p16 = scmp.ge.s32.totalorder %s15, 4
      %s25 = sphi 0, %s27
      %s28 = sphi 0, %s25
      %s29 = sphi 0, %s28
      %s45 = sphi 0, %s29
      %s49 = sphi 0, %s49
      %s51 = sphi 0, %s49
      %s52 = sphi 0, %s51
      %s66 = sphi 0, %s52
      %s70 = sphi 0, %s70
      %s72 = sphi 0, %s70
      %s73 = sphi 0, %s72
      %s87 = sphi 0, %s73
      %s91 = sphi 0, %s91
      %s93 = sphi 0, %s91
      %s94 = sphi 0, %s93
      %s108 = sphi 0, %s94
      %s112 = sphi 0, %s112
      %s114 = sphi 0, %s112
      %s115 = sphi 0, %s114
      %s129 = sphi 0, %s115
      %s135 = sphi 0, %s137
      %s138 = sphi 0, %s135
      %s139 = sphi 0, %s138
      %s155 = sphi 0, %s139
    $region4: #{feedforward_pallas.1} parent=1 // loop_header_branch
      %18 = sbr.rel (%p16) target = $region8
    $region5: #{feedforward_pallas.1} parent=1 // loop_body
      %s20 = ssub.s32 %s15, 1
      %s21 = ssub.s32 %s15, 2
      %s22 = sadd.s32 %s15, 1
      %s23 = ssub.s32 %s15, %s22
      %p24 = scmp.eq.s32.totalorder %s23, 0
      %s26 = sadd.s32 %s25, 1
      %s27 = scalar_select %p24, %s25, %s26
      %p30 = pneg %p24
      %p31 = scmp.eq.s32.totalorder %s15, 1
      %p32 = por %p30, %p31
      %p33 = scmp.ne.s32.totalorder %s25, %s28
      %p34 = scmp.eq.s32.totalorder %s15, 0
      %p35 = por %p33, %p34
      %p36 = scmp.ne.s32.totalorder %s25, %s28
      %p37 = scmp.eq.s32.totalorder %s20, 1
      %p38 = por %p36, %p37
      %p39 = scmp.ne.s32.totalorder %s28, %s29
      %p40 = scmp.eq.s32.totalorder %s20, 0
      %p41 = por %p39, %p40
      %p42 = scmp.ne.s32.totalorder %s28, %s29
      %p43 = scmp.eq.s32.totalorder %s21, 1
      %p44 = por %p42, %p43
      %p46 = scmp.ne.s32.totalorder %s29, %s45
      %p47 = scmp.eq.s32.totalorder %s21, 0
      %p48 = por %p46, %p47
      %s50 = sadd.s32 %s49, 1
      %p53 = scmp.eq.s32.totalorder %s15, 1
      %p54 = scmp.ne.s32.totalorder %s49, %s51
      %p55 = scmp.eq.s32.totalorder %s15, 0
      %p56 = por %p54, %p55
      %p57 = scmp.ne.s32.totalorder %s49, %s51
      %p58 = scmp.eq.s32.totalorder %s20, 1
      %p59 = por %p57, %p58
      %p60 = scmp.ne.s32.totalorder %s51, %s52
      %p61 = scmp.eq.s32.totalorder %s20, 0
      %p62 = por %p60, %p61
      %p63 = scmp.ne.s32.totalorder %s51, %s52
      %p64 = scmp.eq.s32.totalorder %s21, 1
      %p65 = por %p63, %p64
      %p67 = scmp.ne.s32.totalorder %s52, %s66
      %p68 = scmp.eq.s32.totalorder %s21, 0
      %p69 = por %p67, %p68
      %s71 = sadd.s32 %s70, 1
      %p74 = scmp.eq.s32.totalorder %s15, 1
      %p75 = scmp.ne.s32.totalorder %s70, %s72
      %p76 = scmp.eq.s32.totalorder %s15, 0
      %p77 = por %p75, %p76
      %p78 = scmp.ne.s32.totalorder %s70, %s72
      %p79 = scmp.eq.s32.totalorder %s20, 1
      %p80 = por %p78, %p79
      %p81 = scmp.ne.s32.totalorder %s72, %s73
      %p82 = scmp.eq.s32.totalorder %s20, 0
      %p83 = por %p81, %p82
      %p84 = scmp.ne.s32.totalorder %s72, %s73
      %p85 = scmp.eq.s32.totalorder %s21, 1
      %p86 = por %p84, %p85
      %p88 = scmp.ne.s32.totalorder %s73, %s87
      %p89 = scmp.eq.s32.totalorder %s21, 0
      %p90 = por %p88, %p89
      %s92 = sadd.s32 %s91, 1
      %p95 = scmp.eq.s32.totalorder %s15, 1
      %p96 = scmp.ne.s32.totalorder %s91, %s93
      %p97 = scmp.eq.s32.totalorder %s15, 0
      %p98 = por %p96, %p97
      %p99 = scmp.ne.s32.totalorder %s91, %s93
      %p100 = scmp.eq.s32.totalorder %s20, 1
      %p101 = por %p99, %p100
      %p102 = scmp.ne.s32.totalorder %s93, %s94
      %p103 = scmp.eq.s32.totalorder %s20, 0
      %p104 = por %p102, %p103
      %p105 = scmp.ne.s32.totalorder %s93, %s94
      %p106 = scmp.eq.s32.totalorder %s21, 1
      %p107 = por %p105, %p106
      %p109 = scmp.ne.s32.totalorder %s94, %s108
      %p110 = scmp.eq.s32.totalorder %s21, 0
      %p111 = por %p109, %p110
      %s113 = sadd.s32 %s112, 1
      %p116 = scmp.eq.s32.totalorder %s15, 1
      %p117 = scmp.ne.s32.totalorder %s112, %s114
      %p118 = scmp.eq.s32.totalorder %s15, 0
      %p119 = por %p117, %p118
      %p120 = scmp.ne.s32.totalorder %s112, %s114
      %p121 = scmp.eq.s32.totalorder %s20, 1
      %p122 = por %p120, %p121
      %p123 = scmp.ne.s32.totalorder %s114, %s115
      %p124 = scmp.eq.s32.totalorder %s20, 0
      %p125 = por %p123, %p124
      %p126 = scmp.ne.s32.totalorder %s114, %s115
      %p127 = scmp.eq.s32.totalorder %s21, 1
      %p128 = por %p126, %p127
      %p130 = scmp.ne.s32.totalorder %s115, %s129
      %p131 = scmp.eq.s32.totalorder %s21, 0
      %p132 = por %p130, %p131
      %s133 = ssub.s32 %s15, %s22
      %p134 = scmp.eq.s32.totalorder %s133, 0
      %s136 = sadd.s32 %s135, 1
      %s137 = scalar_select %p134, %s135, %s136
      %p140 = pneg %p134
      %p141 = scmp.eq.s32.totalorder %s15, 1
      %p142 = por %p140, %p141
      %p143 = scmp.ne.s32.totalorder %s135, %s138
      %p144 = scmp.eq.s32.totalorder %s15, 0
      %p145 = por %p143, %p144
      %p146 = scmp.ne.s32.totalorder %s135, %s138
      %p147 = scmp.eq.s32.totalorder %s20, 1
      %p148 = por %p146, %p147
      %p149 = scmp.ne.s32.totalorder %s138, %s139
      %p150 = scmp.eq.s32.totalorder %s20, 0
      %p151 = por %p149, %p150
      %p152 = scmp.ne.s32.totalorder %s138, %s139
      %p153 = scmp.eq.s32.totalorder %s21, 1
      %p154 = por %p152, %p153
      %p156 = scmp.ne.s32.totalorder %s139, %s155
      %p157 = scmp.eq.s32.totalorder %s21, 0
      %p158 = por %p156, %p157
      %p159 = scmp.le.s32.totalorder 1, %s15
      %p160 = scmp.lt.s32.totalorder %s15, 3
      %p161 = pnand %p159, %p160
      %p162 = pneg %p161
      // Predicated region
      $region9: #{feedforward_pallas.1} parent=5 // pred_check
        _
      $region10: #{feedforward_pallas.1} parent=5 // pred_check_branch
        %164 = sbr.rel (%p161) target = $region12
      $region11: #{feedforward_pallas.1} parent=5 // pred_region
        %s165 = ssub.s32 %s15, 1
        // Predicated region
        $region13: #{feedforward_pallas.1} parent=11 // pred_check
          %p166 = pneg %p62
        $region14: #{feedforward_pallas.1} parent=11 // pred_check_branch
          %168 = sbr.rel (%p166) target = $region16
        $region15: #{feedforward_pallas.1} parent=11 // pred_region
          %s170 = ssub.s32 256, 256
          %171 = vsyncadd [#allocation5], %s170
          %s172 = sshll.u32 [#allocation4], 4
          %s173 = int_to_ptr.vmem [resolvable:$true] %s172
          %178 = dma.hbm_to_vmem [thread:$0]  %s1, 256, %s173, [#allocation5], 64, 64, 4
        $region16: #{feedforward_pallas.1} parent=11 // pred_fallthru
          _
        // Predicated region
        $region17: #{feedforward_pallas.1} parent=11 // pred_check
          %p179 = pneg %p83
        $region18: #{feedforward_pallas.1} parent=11 // pred_check_branch
          %181 = sbr.rel (%p179) target = $region20
        $region19: #{feedforward_pallas.1} parent=11 // pred_region
          _
        $region20: #{feedforward_pallas.1} parent=11 // pred_fallthru
          _
        // Predicated region
        $region21: #{feedforward_pallas.1} parent=11 // pred_check
          %p182 = pneg %p104
        $region22: #{feedforward_pallas.1} parent=11 // pred_check_branch
          %184 = sbr.rel (%p182) target = $region24
        $region23: #{feedforward_pallas.1} parent=11 // pred_region
          %s186 = ssub.s32 1024, 1024
          %187 = vsyncadd [#allocation5], %s186
          %s188 = sshll.u32 [#allocation6], 4
          %s189 = int_to_ptr.vmem [resolvable:$true] %s188
          %194 = dma.hbm_to_vmem [thread:$0]  %s3, 1024, %s189, [#allocation5], 64, 64, 4
        $region24: #{feedforward_pallas.1} parent=11 // pred_fallthru
          _
        // Predicated region
        $region25: #{feedforward_pallas.1} parent=11 // pred_check
          %p195 = pneg %p125
        $region26: #{feedforward_pallas.1} parent=11 // pred_check_branch
          %197 = sbr.rel (%p195) target = $region28
        $region27: #{feedforward_pallas.1} parent=11 // pred_region
          _
        $region28: #{feedforward_pallas.1} parent=11 // pred_fallthru
          _
      $region12: #{feedforward_pallas.1} parent=5 // pred_fallthru
        _
      %p198 = scmp.lt.s32.totalorder %s15, 2
      // Predicated region
      $region29: #{feedforward_pallas.1} parent=5 // pred_check
        %p199 = pneg %p198
      $region30: #{feedforward_pallas.1} parent=5 // pred_check_branch
        %201 = sbr.rel (%p199) target = $region32
      $region31: #{feedforward_pallas.1} parent=5 // pred_region
        // Predicated region
        $region33: #{feedforward_pallas.1} parent=31 // pred_check
          %p202 = pneg %p35
        $region34: #{feedforward_pallas.1} parent=31 // pred_check_branch
          %204 = sbr.rel (%p202) target = $region36
        $region35: #{feedforward_pallas.1} parent=31 // pred_region
          %s205 = sand.u32 %s25, 1
          %s206 = scalar_lea.sflag [#allocation3], %s205
          %s207 = sand.u32 %s25, 1
          %s208 = smul.addr %s207, 8
          %s209 = scalar_lea.vmem [#allocation2], %s208
          %s211 = ssub.s32 128, 128
          %212 = vsyncadd %s206, %s211
          %s213 = smul.addr %s15, 128
          %s214 = scalar_lea.hbm %s0, %s213
          %s216 = sshll.u32 %s209, 4
          %s217 = int_to_ptr.vmem [resolvable:$true] %s216
          %219 = dma.hbm_to_vmem [thread:$0]  %s214, 128, %s217, %s206
        $region36: #{feedforward_pallas.1} parent=31 // pred_fallthru
          _
      $region32: #{feedforward_pallas.1} parent=5 // pred_fallthru
        _
      %p220 = scmp.le.s32.totalorder 1, %s15
      %p221 = scmp.lt.s32.totalorder %s15, 3
      %p222 = pnand %p220, %p221
      %p223 = pneg %p222
      // Predicated region
      $region37: #{feedforward_pallas.1} parent=5 // pred_check
        _
      $region38: #{feedforward_pallas.1} parent=5 // pred_check_branch
        %225 = sbr.rel (%p222) target = $region40
      $region39: #{feedforward_pallas.1} parent=5 // pred_region
        %s226 = ssub.s32 %s15, 1
        %s227 = sand.u32 %s28, 1
        %s228 = scalar_lea.sflag [#allocation3], %s227
        %s229 = sand.u32 %s28, 1
        %s230 = smul.addr %s229, 8
        %s231 = scalar_lea.vmem [#allocation2], %s230
        // Predicated region
        $region41: #{feedforward_pallas.1} parent=39 // pred_check
          %p232 = pneg %p41
        $region42: #{feedforward_pallas.1} parent=39 // pred_check_branch
          %234 = sbr.rel (%p232) target = $region44
        $region43: #{feedforward_pallas.1} parent=39 // pred_region
          %235 = dma.done %s228, 128
        $region44: #{feedforward_pallas.1} parent=39 // pred_fallthru
          _
        // Predicated region
        $region45: #{feedforward_pallas.1} parent=39 // pred_check
          %p236 = pneg %p62
        $region46: #{feedforward_pallas.1} parent=39 // pred_check_branch
          %238 = sbr.rel (%p236) target = $region48
        $region47: #{feedforward_pallas.1} parent=39 // pred_region
          %239 = dma.done [#allocation5], 256
        $region48: #{feedforward_pallas.1} parent=39 // pred_fallthru
          _
        // Predicated region
        $region49: #{feedforward_pallas.1} parent=39 // pred_check
          %p240 = pneg %p104
        $region50: #{feedforward_pallas.1} parent=39 // pred_check_branch
          %242 = sbr.rel (%p240) target = $region52
        $region51: #{feedforward_pallas.1} parent=39 // pred_region
          %243 = dma.done [#allocation5], 1024
        $region52: #{feedforward_pallas.1} parent=39 // pred_fallthru
          _
        %s244 = sand.u32 %s28, 1
        %s245 = scalar_lea.sflag [#allocation3], %s244
        %s246 = sand.u32 %s28, 1
        %s247 = smul.addr %s246, 8
        %s248 = scalar_lea.vmem [#allocation2], %s247
        %p249 = pneg %p41
        %p250 = pneg %p38
        %p251 = pneg %p62
        %p252 = pneg %p59
        %p253 = pneg %p83
        %p254 = pneg %p80
        %p255 = pneg %p104
        %p256 = pneg %p101
        %p257 = pneg %p125
        %p258 = pneg %p122
        %p259 = pneg %p151
        %p260 = pneg %p148
        %p261 = scmp.lt.s32.totalorder %s20, 1
        %s262 = scalar_select %p261, %s20, 1
        %s263 = smul.addr %s262, 8
        %s264 = scalar_lea.vmem %s5, %s263
        %p265 = scmp.lt.s32.totalorder %s20, 1
        %s266 = scalar_select %p265, %s20, 1
        %s267 = smul.addr %s266, 8
        %s268 = scalar_lea.vmem %s5, %s267
        %v270 = vld [vmem:[%s231] sm:$0xff]
        %v271 = vpack.c.bf16 %v270, %v270
        %v272 = vld [vmem:[#allocation4] sm:$0xf]
        %v273 = vld [vmem:[#allocation4 + $0x4] sm:$0xf]
        %v274 = vld [vmem:[#allocation4 + $0x8] sm:$0xf]
        %v275 = vld [vmem:[#allocation4 + $0xc] sm:$0xf]
        %v276 = vld [vmem:[%s2] sm:$0x1]
        %v278 = vlaneseq
        %v279 = vshrl.u32 %v278, 7
        %v280 = vsub.s32 0, %v279
        %v281 = vrot.slane %v276, %v280
        %v287 = vunpack.c.l.b16 %v272
        %v288 = vunpack.c.l.b16 %v273
        %v289 = vunpack.c.l.b16 %v274
        %v290 = vunpack.c.l.b16 %v275
        %v291 = vpack.c.b16 %v288, %v287
        %v292 = vpack.c.b16 %v290, %v289
        %vm295 = vcmask 261120
        %v297 = vsel %vm295, %v271, 0
        %299 = vmatprep.subr.bf16.mxu0 0
        %300 = vmatpush1.bf16.msra.mxu0 %v291
        %301 = vmatprep.subr.bf16.mxu0 0
        %302 = vmatpush1.bf16.msra.mxu0 %v292
        %303 = vmatprep.subr.bf16.mxu0 0
        %304 = vmatpush1.bf16.msra.mxu0 0
        %305 = vmatprep.subr.bf16.mxu0 0
        %306 = vmatpush1.bf16.msra.mxu0 0
        %307 = vmatprep.subr.bf16.mxu0 0
        %308 = vmatpush1.bf16.msra.mxu0 0
        %309 = vmatprep.subr.bf16.mxu0 0
        %310 = vmatpush1.bf16.msra.mxu0 0
        %311 = vmatprep.subr.bf16.mxu0 0
        %312 = vmatpush1.bf16.msra.mxu0 0
        %313 = vmatprep.subr.bf16.mxu0 0
        %314 = vmatpush1.bf16.msra.mxu0 0
        %315 = vmatprep.subr.bf16.mxu0 0
        %316 = vmatpush1.bf16.msra.mxu0 0
        %317 = vmatprep.subr.bf16.mxu0 0
        %318 = vmatpush1.bf16.msra.mxu0 0
        %319 = vmatprep.subr.bf16.mxu0 0
        %320 = vmatpush1.bf16.msra.mxu0 0
        %321 = vmatprep.subr.bf16.mxu0 0
        %322 = vmatpush1.bf16.msra.mxu0 0
        %323 = vmatprep.subr.bf16.mxu0 0
        %324 = vmatpush1.bf16.msra.mxu0 0
        %325 = vmatprep.subr.bf16.mxu0 0
        %326 = vmatpush1.bf16.msra.mxu0 0
        %327 = vmatprep.subr.bf16.mxu0 0
        %328 = vmatpush1.bf16.msra.mxu0 0
        %329 = vmatprep.subr.bf16.mxu0 0
        %330 = vmatpush1.bf16.msra.mxu0 0
        %331 = vmatprep.mubr.bf16.mxu0 0
        %332 = vmatmul.mubr.bf16.gmra.mrb[0].mxu0 %v297
        %v333 = vpop.f32.mrb[0].mxu0
        %v334 = vadd.f32 %v281, %v333
        %v335 = vpop.f32.mrb[0].mxu0
        %v336 = vpop.f32.mrb[0].mxu0
        %v337 = vpop.f32.mrb[0].mxu0
        %338 = vdwg.mxu0
        %v339 = vmax.f32 %v334, 0.0
        %v340 = vpack.c.bf16 %v339, %v339
        %v341 = vld [vmem:[#allocation6] sm:$0xf]
        %v342 = vld [vmem:[#allocation6 + $0x4] sm:$0xf]
        %v343 = vld [vmem:[#allocation6 + $0x8] sm:$0xf]
        %v344 = vld [vmem:[#allocation6 + $0xc] sm:$0xf]
        %v345 = vld [vmem:[#allocation6 + $0x10] sm:$0xf]
        %v346 = vld [vmem:[#allocation6 + $0x14] sm:$0xf]
        %v347 = vld [vmem:[#allocation6 + $0x18] sm:$0xf]
        %v348 = vld [vmem:[#allocation6 + $0x1c] sm:$0xf]
        %v349 = vld [vmem:[#allocation6 + $0x20] sm:$0xf]
        %v350 = vld [vmem:[#allocation6 + $0x24] sm:$0xf]
        %v351 = vld [vmem:[#allocation6 + $0x28] sm:$0xf]
        %v352 = vld [vmem:[#allocation6 + $0x2c] sm:$0xf]
        %v353 = vld [vmem:[#allocation6 + $0x30] sm:$0xf]
        %v354 = vld [vmem:[#allocation6 + $0x34] sm:$0xf]
        %v355 = vld [vmem:[#allocation6 + $0x38] sm:$0xf]
        %v356 = vld [vmem:[#allocation6 + $0x3c] sm:$0xf]
        %v357 = vld [vmem:[%s4] sm:$0x1]
        %v359 = vlaneseq
        %v360 = vshrl.u32 %v359, 7
        %v361 = vsub.s32 0, %v360
        %v362 = vrot.slane %v357, %v361
        %v380 = vunpack.c.l.b16 %v341
        %v381 = vunpack.c.l.b16 %v342
        %v382 = vunpack.c.l.b16 %v343
        %v383 = vunpack.c.l.b16 %v344
        %v384 = vunpack.c.l.b16 %v345
        %v385 = vunpack.c.l.b16 %v346
        %v386 = vunpack.c.l.b16 %v347
        %v387 = vunpack.c.l.b16 %v348
        %v388 = vunpack.c.l.b16 %v349
        %v389 = vunpack.c.l.b16 %v350
        %v390 = vunpack.c.l.b16 %v351
        %v391 = vunpack.c.l.b16 %v352
        %v392 = vunpack.c.l.b16 %v353
        %v393 = vunpack.c.l.b16 %v354
        %v394 = vunpack.c.l.b16 %v355
        %v395 = vunpack.c.l.b16 %v356
        %v396 = vpack.c.b16 %v381, %v380
        %v397 = vpack.c.b16 %v383, %v382
        %v398 = vpack.c.b16 %v385, %v384
        %v399 = vpack.c.b16 %v387, %v386
        %v400 = vpack.c.b16 %v389, %v388
        %v401 = vpack.c.b16 %v391, %v390
        %v402 = vpack.c.b16 %v393, %v392
        %v403 = vpack.c.b16 %v395, %v394
        %412 = vmatprep.subr.bf16.mxu0 0
        %413 = vmatpush1.bf16.msra.mxu0 %v396
        %414 = vmatprep.subr.bf16.mxu0 0
        %415 = vmatpush1.bf16.msra.mxu0 %v397
        %416 = vmatprep.subr.bf16.mxu0 0
        %417 = vmatpush1.bf16.msra.mxu0 %v398
        %418 = vmatprep.subr.bf16.mxu0 0
        %419 = vmatpush1.bf16.msra.mxu0 %v399
        %420 = vmatprep.subr.bf16.mxu0 0
        %421 = vmatpush1.bf16.msra.mxu0 %v400
        %422 = vmatprep.subr.bf16.mxu0 0
        %423 = vmatpush1.bf16.msra.mxu0 %v401
        %424 = vmatprep.subr.bf16.mxu0 0
        %425 = vmatpush1.bf16.msra.mxu0 %v402
        %426 = vmatprep.subr.bf16.mxu0 0
        %427 = vmatpush1.bf16.msra.mxu0 %v403
        %428 = vmatprep.subr.bf16.mxu0 0
        %429 = vmatpush1.bf16.msra.mxu0 0
        %430 = vmatprep.subr.bf16.mxu0 0
        %431 = vmatpush1.bf16.msra.mxu0 0
        %432 = vmatprep.subr.bf16.mxu0 0
        %433 = vmatpush1.bf16.msra.mxu0 0
        %434 = vmatprep.subr.bf16.mxu0 0
        %435 = vmatpush1.bf16.msra.mxu0 0
        %436 = vmatprep.subr.bf16.mxu0 0
        %437 = vmatpush1.bf16.msra.mxu0 0
        %438 = vmatprep.subr.bf16.mxu0 0
        %439 = vmatpush1.bf16.msra.mxu0 0
        %440 = vmatprep.subr.bf16.mxu0 0
        %441 = vmatpush1.bf16.msra.mxu0 0
        %442 = vmatprep.subr.bf16.mxu0 0
        %443 = vmatpush1.bf16.msra.mxu0 0
        %444 = vmatprep.mubr.bf16.mxu0 0
        %445 = vmatmul.mubr.bf16.gmra.mrb[0].mxu0 %v340
        %v446 = vpop.f32.mrb[0].mxu0
        %v447 = vadd.f32 %v362, %v446
        %v448 = vpop.f32.mrb[0].mxu0
        %v449 = vpop.f32.mrb[0].mxu0
        %v450 = vpop.f32.mrb[0].mxu0
        %451 = vdwg.mxu0
        %452 = vst [vmem:[%s268] sm:$0xff] %v447
        %p453 = scmp.lt.s32.totalorder %s20, 1
        %s454 = scalar_select %p453, %s20, 1
        %s455 = smul.addr %s454, 8
        %s456 = scalar_lea.vmem %s5, %s455
        // Predicated region
        $region53: #{feedforward_pallas.1} parent=39 // pred_check
          %p457 = pneg %p148
        $region54: #{feedforward_pallas.1} parent=39 // pred_check_branch
          %459 = sbr.rel (%p457) target = $region56
        $region55: #{feedforward_pallas.1} parent=39 // pred_region
          _
        $region56: #{feedforward_pallas.1} parent=39 // pred_fallthru
          _
      $region40: #{feedforward_pallas.1} parent=5 // pred_fallthru
        _
      %p460 = scmp.le.s32.totalorder 2, %s15
      // Predicated region
      $region57: #{feedforward_pallas.1} parent=5 // pred_check
        %p461 = pneg %p460
      $region58: #{feedforward_pallas.1} parent=5 // pred_check_branch
        %463 = sbr.rel (%p461) target = $region60
      $region59: #{feedforward_pallas.1} parent=5 // pred_region
        %s464 = ssub.s32 %s15, 2
        // Predicated region
        $region61: #{feedforward_pallas.1} parent=59 // pred_check
          %p465 = pneg %p154
        $region62: #{feedforward_pallas.1} parent=59 // pred_check_branch
          %467 = sbr.rel (%p465) target = $region64
        $region63: #{feedforward_pallas.1} parent=59 // pred_region
          %p468 = scmp.lt.s32.totalorder %s21, 1
          %s469 = scalar_select %p468, %s21, 1
          %s470 = smul.addr %s469, 8
          %s471 = scalar_lea.vmem %s5, %s470
        $region64: #{feedforward_pallas.1} parent=59 // pred_fallthru
          _
      $region60: #{feedforward_pallas.1} parent=5 // pred_fallthru
        _
    $region6: #{feedforward_pallas.1} parent=1 // loop_footer
      %s19 = sadd.s32 1, %s15
    $region7: #{feedforward_pallas.1} parent=1 // loop_footer_branch
      %14 = sbr.rel target = $region3
    $region8: #{feedforward_pallas.1} parent=1 // loop_exit
      _
    %472 = vsyncpa [#allocation3], 1
    %s473 = scalar_lea.sflag [#allocation3], 1
    %474 = vsyncpa %s473, 1
    %475 = vsyncpa [#allocation5], 1

</llo_original>
